<compile_context>
chip_gen: v5e
topology: v5e:2x2
jax: 0.10.0
libtpu: 0.0.40
codegen_flags: <defaults>
</compile_context>

<pallas_src>
import jax
import jax.numpy as jnp
from jax.experimental import pallas as pl
from jax.experimental.pallas import tpu as pltpu


def _rescale_kernel(w_ref, x_ref, o_ref):
    # w_ref: (1, tc) resident weight tile; x_ref/o_ref: (tb, tc) streaming tiles.
    # Multiply in the promoted dtype (matches PyTorch's promoted broadcast),
    # cast once on store.
    o_ref[...] = (w_ref[...] * x_ref[...]).astype(o_ref.dtype)


def _round_up(n, m):
    return ((n + m - 1) // m) * m


def _sublane(itemsize):
    return {4: 8, 2: 16, 1: 32}.get(itemsize, 8)


def _vmem_limit_cap():
    # ~5/8 of physical VMEM, never above 48 MiB:
    #   v7x  (64 MiB physical)  -> 40 MiB
    #   v5e/v6e (128 MiB)       -> 48 MiB
    cap = 48 * 1024 * 1024
    try:
        info = pltpu.get_tpu_info()
        phys = int(getattr(info, "vmem_capacity_bytes", 0) or 0)
        if phys > 0:
            cap = min(cap, (phys * 5) // 8)
    except Exception:
        pass
    return max(cap, 16 * 1024 * 1024)


def rescale(x, weight, *, out_dtype=None, tb=None, tc=None, force_pallas=False):
    """out = weight * x, weight broadcast over the trailing channel axis.

    `out_dtype` defaults to the promoted dtype of (x, weight) to match PyTorch;
    pass e.g. `out_dtype=x.dtype` (bf16) to halve write-side HBM traffic when
    the consumer tolerates it.
    """
    orig_shape = x.shape
    C = orig_shape[-1]
    assert weight.shape == (C,), (weight.shape, C)

    if out_dtype is None:
        out_dtype = jnp.promote_types(x.dtype, weight.dtype)

    B = 1
    for d in orig_shape[:-1]:
        B *= d

    x_item = jnp.dtype(x.dtype).itemsize
    o_item = jnp.dtype(out_dtype).itemsize
    w_item = jnp.dtype(weight.dtype).itemsize

    # Small-input fast path: launch + per-step overhead dwarfs the work, and
    # XLA fuses the broadcast-multiply into neighbouring ops for free.
    if not force_pallas and B * C * (x_item + o_item) < 2 * 1024 * 1024:
        return (weight * x).astype(out_dtype)

    # ---- Lane-dense 2-D view without padding x -----------------------------
    if C % 128 == 0:
        B_eff, C_eff = B, C
        x2d = x.reshape(B_eff, C_eff)
        w2d = weight.reshape(1, C_eff)
    elif 128 % C == 0 and (B * C) % 128 == 0:
        # Tiny channel count dividing 128 (e.g. 32): free reshape of x, tile
        # only the KB-sized weight -> unmasked stores, zero x padding.
        B_eff, C_eff = (B * C) // 128, 128
        x2d = x.reshape(B_eff, C_eff)
        w2d = jnp.tile(weight, 128 // C).reshape(1, C_eff)
    else:
        # Non-multiple-of-128 channels: full-C block (block dim == array dim),
        # masked tail lanes instead of pad + slice HBM passes.
        B_eff, C_eff = B, C
        x2d = x.reshape(B_eff, C_eff)
        w2d = weight.reshape(1, C_eff)

    sublane = _sublane(x_item)

    # Channel tile: full width when not a 128-multiple, else up to 8192 lanes.
    if tc is None:
        tc = C_eff if C_eff % 128 != 0 else min(C_eff, 8192)

    # Row tile: ~4 MiB per (larger of x/out) block; mem-bound roofline already
    # saturates around 512-1024 rows so bigger blocks only hurt pipelining.
    if tb is None:
        target_block_bytes = 4 * 1024 * 1024
        bytes_per_row = max(1, tc * max(x_item, o_item))
        tb = max(1, target_block_bytes // bytes_per_row)
        tb = max(sublane, (tb // sublane) * sublane)
        tb = min(tb, B_eff)  # never larger than the array (full-dim block ok)
        # Guarantee >= 4 grid steps along B when B permits: both v7x TCs get
        # work and output writeback overlaps the next input fetch.
        if pl.cdiv(B_eff, tb) < 4 and B_eff >= 4 * sublane * 64:
            tb = max(sublane, _round_up(pl.cdiv(B_eff, 4), sublane))
    tb = max(int(tb), 1)
    tc = int(tc)

    n_ct = pl.cdiv(C_eff, tc)
    n_bt = pl.cdiv(B_eff, tb)
    # Channel axis outermost -> weight tile stays resident across the batch sweep.
    grid = (n_ct, n_bt)

    est = 2 * (tb * tc * x_item + tb * tc * o_item + tc * w_item)
    vmem_limit = int(min(_vmem_limit_cap(), max(2 * est, 16 * 1024 * 1024)))

    out2d = pl.pallas_call(
        _rescale_kernel,
        out_shape=jax.ShapeDtypeStruct((B_eff, C_eff), out_dtype),
        grid_spec=pltpu.PrefetchScalarGridSpec(
            num_scalar_prefetch=0,
            grid=grid,
            in_specs=[
                pl.BlockSpec((1, tc), lambda j, i: (0, j)),    # weight (resident)
                pl.BlockSpec((tb, tc), lambda j, i: (i, j)),   # x
            ],
            out_specs=pl.BlockSpec((tb, tc), lambda j, i: (i, j)),
        ),
        compiler_params=pltpu.CompilerParams(
            dimension_semantics=("parallel", "parallel"),
            vmem_limit_bytes=vmem_limit,
        ),
    )(w2d, x2d)

    return out2d.reshape(orig_shape)


if __name__ == "__main__":
    key = jax.random.PRNGKey(0)
    kx, kw = jax.random.split(key)

    # 1) Tiny channels dividing 128 (C=32): weight tiled to 128 lanes, x viewed
    #    as (B*C/128, 128) -- lane-dense, zero padding.
    B, C = 16, 32
    x = jax.random.normal(kx, (B, C), dtype=jnp.float32)
    weight = jnp.ones((C,), jnp.float32) + 0.1 * jax.random.normal(kw, (C,), jnp.float32)
    out = jax.block_until_ready(rescale(x, weight, force_pallas=True))
    ref = weight[None, :] * x
    assert out.shape == ref.shape and out.dtype == ref.dtype
    assert jnp.allclose(out, ref, atol=1e-6, rtol=1e-6)

    # 2) Lane-aligned channels (C=128): direct (B, C) tiling.
    C2 = 128
    x2 = jax.random.normal(kx, (B, C2), dtype=jnp.float32)
    w2 = jnp.ones((C2,), jnp.float32) + 0.05 * jax.random.normal(kw, (C2,), jnp.float32)
    out2 = jax.block_until_ready(rescale(x2, w2, force_pallas=True))
    assert jnp.allclose(out2, w2[None, :] * x2, atol=1e-6, rtol=1e-6)

    # 3) Non-multiple-of-128 channels, leading dims, bf16 x with f32 weight:
    #    full-C block (masked tail lanes), PyTorch-style f32-promoted output.
    shape3 = (2, 4, 16, 24)
    x3 = jax.random.normal(kx, shape3, dtype=jnp.bfloat16)
    w3 = jnp.ones((24,), jnp.float32) + 0.2 * jax.random.normal(kw, (24,), jnp.float32)
    out3 = jax.block_until_ready(rescale(x3, w3, force_pallas=True))
    ref3 = w3 * x3.astype(jnp.float32)
    assert out3.dtype == jnp.float32 and out3.shape == shape3
    assert jnp.allclose(out3, ref3, atol=1e-5, rtol=1e-5)

    # 3b) Optional bf16 output (halves write-side HBM traffic; intentionally
    #     diverges from PyTorch's f32 promotion when requested).
    out3b = jax.block_until_ready(
        rescale(x3, w3, out_dtype=jnp.bfloat16, force_pallas=True))
    assert out3b.dtype == jnp.bfloat16
    assert jnp.allclose(out3b.astype(jnp.float32), ref3, atol=3e-2, rtol=3e-2)

    # 4) Small-input auto fast path (plain jnp, no pallas launch).
    out4 = jax.block_until_ready(rescale(x, weight))
    assert jnp.allclose(out4, ref, atol=1e-6, rtol=1e-6)

    print("KERNEL_OK")
</pallas_src>

<mosaic_0001>
module attributes {stable_mosaic.version = 11 : i64} {
  func.func @_rescale_kernel(%arg0: i32, %arg1: i32, %arg2: memref<1x128xf32, #tpu.memory_space<vmem>>, %arg3: memref<4x128xf32, #tpu.memory_space<vmem>>, %arg4: memref<4x128xf32, #tpu.memory_space<vmem>>) attributes {dimension_semantics = [#tpu.dimension_semantics<parallel>, #tpu.dimension_semantics<parallel>], iteration_bounds = array<i64: 1, 1>, scalar_prefetch = 0 : i64, scratch_operands = 0 : i64, tpu.core_type = #tpu.core_type<tc>, window_params = [{transform_indices = @transform_0, window_bounds = array<i64: 1, 128>}, {transform_indices = @transform_1, window_bounds = array<i64: 4, 128>}, {transform_indices = @transform_2, window_bounds = array<i64: 4, 128>}]} {
    %c0 = arith.constant 0 : index
    %c0_0 = arith.constant 0 : index
    %0 = vector.load %arg2[%c0, %c0_0] : memref<1x128xf32, #tpu.memory_space<vmem>>, vector<1x128xf32>
    %c0_1 = arith.constant 0 : index
    %c0_2 = arith.constant 0 : index
    %1 = vector.load %arg3[%c0_1, %c0_2] : memref<4x128xf32, #tpu.memory_space<vmem>>, vector<4x128xf32>
    %2 = vector.broadcast %0 : vector<1x128xf32> to vector<4x128xf32>
    %3 = arith.mulf %2, %1 : vector<4x128xf32>
    %c0_3 = arith.constant 0 : index
    %c0_4 = arith.constant 0 : index
    %4 = vector.load %arg4[%c0_3, %c0_4] : memref<4x128xf32, #tpu.memory_space<vmem>>, vector<4x128xf32>
    tpu.vector_store %arg4[%c0_3, %c0_4], %3 {strides = array<i32>} : memref<4x128xf32, #tpu.memory_space<vmem>>, vector<4x128xf32>,
    return
  }
  func.func @transform_0(%arg0: i32, %arg1: i32) -> (i32, i32) {
    %c0_i32 = arith.constant 0 : i32
    %c0_i32_0 = arith.constant 0 : i32
    return %c0_i32, %arg0 : i32, i32
  }
  func.func @transform_1(%arg0: i32, %arg1: i32) -> (i32, i32) {
    %c0_i32 = arith.constant 0 : i32
    return %arg1, %arg0 : i32, i32
  }
  func.func @transform_2(%arg0: i32, %arg1: i32) -> (i32, i32) {
    %c0_i32 = arith.constant 0 : i32
    return %arg1, %arg0 : i32, i32
  }
}

</mosaic_0001>

<llo_original>
// kernel: tpu_custom_call.1
$region0: #{tpu_custom_call.1}
  #allocation0 [shape = 'u32[]', space=smem, size = 0x4, offset = 0x4, fixed_abs, tag = 'smem constant byte address 0x4 - core index']
  #allocation1 [shape = 'u32[72,128]{1,0:T(1,128)}', space=vmem, size = 0x9000, scoped, tag = 'internal scratch']
  %s0 = inlined_call_operand.hbm [shape: f32[1,128], index: 0, kind: input, shape index: {}]
  %s1 = inlined_call_operand.hbm [shape: f32[4,128], index: 1, kind: input, shape index: {}]
  %s2 = inlined_call_operand.hbm [shape: f32[4,128], index: 2, kind: output, shape index: {}]
  %s3 = sld [smem:[#allocation0]]
  $region26: #{tpu_custom_call.1} parent=0
    _
  %s5 = ssub.s32 1, %s3
  %s6 = scalar_select 0, %s5, %s3
  $region1: #{tpu_custom_call.1} parent=0
    #allocation2 [shape = 'u8[512]{0}', space=vmem, size = 0x400, scoped, tag = 'input window, operand 0, single buffered']
    #allocation3 [shape = 's32[1]{0}', space=sflag, size = 0x4, scoped, tag = 'scoped memory for tpu_custom_call.1']
    #allocation4 [shape = 's32[1]{0}', space=sflag, size = 0x4, scoped, tag = 'scoped memory for tpu_custom_call.1']
    #allocation5 [shape = 'u8[2048]{0}', space=vmem, size = 0x800, scoped, tag = 'input window, operand 1, single buffered']
    #allocation6 [shape = 's32[1]{0}', space=sflag, size = 0x4, scoped, tag = 'scoped memory for tpu_custom_call.1']
    #allocation7 [shape = 'u8[2048]{0}', space=vmem, size = 0x800, scoped, tag = 'output window, operand 0, single buffered']
    %7 = vsyncpa [#allocation3], 0
    %8 = vsyncpa [#allocation6], 0
    %9 = vsyncpa [#allocation4], 0
    // Predicated region
    $region2: #{tpu_custom_call.1} parent=1 // pred_check
      _
    $region3: #{tpu_custom_call.1} parent=1 // pred_check_branch
      %11 = sbr.rel (0) target = $region5
    $region4: #{tpu_custom_call.1} parent=1 // pred_region
      %13 = vsyncadd [#allocation3], 0
      %s15 = sshll.u32 %s0, 4
      %s16 = int_to_ptr.hbm [resolvable:$true] %s15
      %s17 = sshll.u32 [#allocation2], 4
      %s18 = int_to_ptr.vmem [resolvable:$true] %s17
      %20 = dma.hbm_to_vmem [thread:$0]  %s16, 16, %s18, [#allocation3]
    $region5: #{tpu_custom_call.1} parent=1 // pred_fallthru
      _
    // Predicated region
    $region6: #{tpu_custom_call.1} parent=1 // pred_check
      _
    $region7: #{tpu_custom_call.1} parent=1 // pred_check_branch
      %22 = sbr.rel (0) target = $region9
    $region8: #{tpu_custom_call.1} parent=1 // pred_region
      %24 = vsyncadd [#allocation6], 0
      %s26 = sshll.u32 %s1, 4
      %s27 = int_to_ptr.hbm [resolvable:$true] %s26
      %s28 = sshll.u32 [#allocation5], 4
      %s29 = int_to_ptr.vmem [resolvable:$true] %s28
      %31 = dma.hbm_to_vmem [thread:$0]  %s27, 64, %s29, [#allocation6]
    $region9: #{tpu_custom_call.1} parent=1 // pred_fallthru
      _
    // Predicated region
    $region10: #{tpu_custom_call.1} parent=1 // pred_check
      _
    $region11: #{tpu_custom_call.1} parent=1 // pred_check_branch
      %33 = sbr.rel (0) target = $region13
    $region12: #{tpu_custom_call.1} parent=1 // pred_region
      %35 = dma.done [#allocation3], 16
    $region13: #{tpu_custom_call.1} parent=1 // pred_fallthru
      _
    // Predicated region
    $region14: #{tpu_custom_call.1} parent=1 // pred_check
      _
    $region15: #{tpu_custom_call.1} parent=1 // pred_check_branch
      %37 = sbr.rel (0) target = $region17
    $region16: #{tpu_custom_call.1} parent=1 // pred_region
      %39 = dma.done [#allocation6], 64
    $region17: #{tpu_custom_call.1} parent=1 // pred_fallthru
      _
    %v40 = vld [vmem:[#allocation2] sm:$0x1]
    %v41 = vld [vmem:[#allocation5] sm:$0xf]
    %v43 = vperm.slane %v40, 0
    %v45 = vmul.f32 %v43, %v41
    %46 = vst [vmem:[#allocation7] sm:$0xf] %v45
    // Predicated region
    $region18: #{tpu_custom_call.1} parent=1 // pred_check
      _
    $region19: #{tpu_custom_call.1} parent=1 // pred_check_branch
      %48 = sbr.rel (0) target = $region21
    $region20: #{tpu_custom_call.1} parent=1 // pred_region
      %50 = vsyncadd [#allocation4], 0
      %s52 = sshll.u32 [#allocation7], 4
      %s53 = int_to_ptr.vmem [resolvable:$true] %s52
      %s54 = sshll.u32 %s2, 4
      %s55 = int_to_ptr.hbm [resolvable:$true] %s54
      %57 = dma.vmem_to_hbm [thread:$0]  %s53, 64, %s55, [#allocation4]
    $region21: #{tpu_custom_call.1} parent=1 // pred_fallthru
      _
    // Predicated region
    $region22: #{tpu_custom_call.1} parent=1 // pred_check
      _
    $region23: #{tpu_custom_call.1} parent=1 // pred_check_branch
      %59 = sbr.rel (0) target = $region25
    $region24: #{tpu_custom_call.1} parent=1 // pred_region
      %61 = dma.done [#allocation4], 64
    $region25: #{tpu_custom_call.1} parent=1 // pred_fallthru
      _
    %62 = vsyncpa [#allocation3], 1
    %63 = vsyncpa [#allocation6], 1
    %64 = vsyncpa [#allocation4], 1

</llo_original>
